<compile_context>
chip_gen: v6e
topology: v6e:2x2x1
jax: 0.10.0
libtpu: 0.0.40
codegen_flags: <defaults>
</compile_context>

<pallas_src>
import jax
import jax.numpy as jnp
from jax.experimental import pallas as pl
from jax.experimental.pallas import tpu as pltpu


_VMEM_LIMIT = 48 * 1024 * 1024    # raised scoped-VMEM limit; safe on v5e/v6e (128 MiB
                                  # physical) and under v7x's 64 MiB physical VMEM.
_TILE_BUDGET = 24 * 1024 * 1024   # budget for the double-buffered streaming tiles.


def _pick_row_tile(B, H, W, C, itemsize):
    """Largest multiple-of-8 row tile dividing H whose double-buffered streams
    (2 inputs + 2 outputs in the gating kernel) fit in the tile budget."""
    if H % 8 != 0:
        return H                                   # full-extent block satisfies (8,128) rule
    per_row = 4 * 2 * W * C * itemsize             # 4 streams, double buffered
    cap = max(8, (_TILE_BUDGET // per_row) // 8 * 8)
    if B < 2 and H % 16 == 0:                      # keep >=2 grid steps for megacore
        cap = min(cap, H // 2)
    best = 8
    for th in range(8, H + 1, 8):
        if H % th == 0 and th <= cap:
            best = th
    return min(best, H)


# ----------------------------- Pallas kernel 1 ------------------------------
# Adaptive-average pools of x1, row-tiled over H.
#   ph_tiles[b, t] = sum over W of the rows in tile t        -> (C, TH)
#   pw[b]          = sum over H (accumulated across tiles)   -> (C, W)
def _reduce_kernel(x_ref, ph_ref, pw_ref):
    x = x_ref[0].astype(jnp.float32)               # (C, TH, W)
    ph_ref[0, 0] = jnp.sum(x, axis=2)              # row sums (over W) -> (C, TH)

    @pl.when(pl.program_id(1) == 0)                # accumulator init (reduction axis)
    def _():
        pw_ref[...] = jnp.zeros_like(pw_ref)

    pw_ref[0] += jnp.sum(x, axis=1)                # column sums (over this H tile)


# ----------------------------- Pallas kernel 2 ------------------------------
# Elementwise gating (the HBM-bound hot path):
#   out1 = x1 * gate,  out2 = x2 * gate, with gate[b, c, j] broadcast over rows.
def _gate_kernel(x1_ref, x2_ref, attn_ref, out1_ref, out2_ref):
    a = attn_ref[...][:, :, None, :]               # (1, C, 1, W) -- sublane broadcast
    out1_ref[...] = x1_ref[...] * a
    out2_ref[...] = x2_ref[...] * a


# ------------------------------ batched CA MLP -------------------------------
# TODO(synk): the tiny (B*(H+W), C) MLP is deliberately left in plain batched
# JAX per the performance review -- per-batch it would starve the MXU and it is
# negligible next to the HBM-bound pooling/gating kernels above.
def _ca_mlp(ph_sum, pw_sum, params, H, W):
    eps = 1e-5
    y = jnp.concatenate([ph_sum / W, pw_sum / H], axis=2)                # (B, C, H+W)
    t = jnp.einsum('rc,bcn->brn', params['ca_w1'], y)                    # (B, Cr, H+W)
    scale = params['ca_bn_gamma'] / jnp.sqrt(params['ca_bn_var'] + eps)  # BN eval mode
    shift = params['ca_bn_beta'] - params['ca_bn_mean'] * scale
    t = t * scale[None, :, None] + shift[None, :, None]
    t = jnp.where(t >= 0, t, 0.1 * t)                                    # LeakyReLU(0.1)
    att = jax.nn.sigmoid(jnp.einsum('cr,brn->bcn', params['ca_w2'], t))  # (B, C, H+W)
    # In the original module x1_h ([B,C,1,h]) and x1_w ([B,C,1,w]) are both
    # expand_as'd onto [B,C,H,W]: broadcast over rows, indexed by the *column*
    # position (valid only because H == W), so the combined gate is:
    return att[:, :, :H] * att[:, :, H:]                                 # (B, C, W)


# --------------------------------- wrapper -----------------------------------
def ca_block_forward(x1, x2, params):
    """x1, x2: NCHW [B, C, L, L] -> (x1 * gate, x2 * gate), both NCHW."""
    B, C, H, W = x1.shape
    assert H == W, "CA_Block's expand_as broadcast requires square inputs (H == W)"
    TH = _pick_row_tile(B, H, W, C, x1.dtype.itemsize)
    nH = H // TH
    grid = (B, nH)

    # ---- kernel 1: pooled reductions of x1 (row-tiled, f32 accumulation) ----
    ph_tiles, pw = pl.pallas_call(
        _reduce_kernel,
        out_shape=(jax.ShapeDtypeStruct((B, nH, C, TH), jnp.float32),
                   jax.ShapeDtypeStruct((B, C, W), jnp.float32)),
        grid=grid,
        in_specs=[pl.BlockSpec((1, C, TH, W), lambda b, t: (b, 0, t, 0))],
        out_specs=(pl.BlockSpec((1, 1, C, TH), lambda b, t: (b, t, 0, 0)),
                   pl.BlockSpec((1, C, W), lambda b, t: (b, 0, 0))),
        compiler_params=pltpu.CompilerParams(
            dimension_semantics=("parallel", "arbitrary"),
            vmem_limit_bytes=_VMEM_LIMIT),
    )(x1)

    ph = jnp.moveaxis(ph_tiles, 1, 2).reshape(B, C, H)     # (B, C, H) row sums (tiny)

    # ---- tiny CA MLP, batched over B in plain JAX ----
    gate = _ca_mlp(ph, pw, params, H, W).astype(x1.dtype)  # (B, C, W)

    # ---- kernel 2: elementwise gating of x1 and x2 (row-tiled) ----
    out1, out2 = pl.pallas_call(
        _gate_kernel,
        out_shape=(jax.ShapeDtypeStruct((B, C, H, W), x1.dtype),
                   jax.ShapeDtypeStruct((B, C, H, W), x2.dtype)),
        grid=grid,
        in_specs=[pl.BlockSpec((1, C, TH, W), lambda b, t: (b, 0, t, 0)),
                  pl.BlockSpec((1, C, TH, W), lambda b, t: (b, 0, t, 0)),
                  pl.BlockSpec((1, C, W), lambda b, t: (b, 0, 0))],
        out_specs=(pl.BlockSpec((1, C, TH, W), lambda b, t: (b, 0, t, 0)),
                   pl.BlockSpec((1, C, TH, W), lambda b, t: (b, 0, t, 0))),
        compiler_params=pltpu.CompilerParams(
            dimension_semantics=("parallel", "parallel"),
            vmem_limit_bytes=_VMEM_LIMIT),
    )(x1, x2, gate)

    return out1, out2


# ------------------------- deterministic parameters ---------------------------
def init_params(key, channels, reduction):
    cr = channels // reduction
    k1, k2 = jax.random.split(key, 2)
    return {
        'ca_w1': 0.3 * jax.random.normal(k1, (cr, channels), jnp.float32),  # Conv2d(C, C//r, 1, bias=False)
        'ca_w2': 0.3 * jax.random.normal(k2, (channels, cr), jnp.float32),  # Conv2d(C//r, C, 1, bias=False)
        'ca_bn_gamma': jnp.ones((cr,), jnp.float32),   # BatchNorm2d eval-mode defaults
        'ca_bn_beta': jnp.zeros((cr,), jnp.float32),
        'ca_bn_mean': jnp.zeros((cr,), jnp.float32),
        'ca_bn_var': jnp.ones((cr,), jnp.float32),
    }


# --------------------------- pure-JAX reference (NCHW) ------------------------
def reference_forward(x1, x2, params):
    B, C, H, W = x1.shape
    eps = 1e-5
    x1_h = jnp.mean(x1, axis=3)                       # AdaptiveAvgPool2d((h,1)) -> [B,C,h]
    x1_w = jnp.mean(x1, axis=2)                       # AdaptiveAvgPool2d((1,w)) -> [B,C,w]
    y1 = jnp.concatenate([x1_h, x1_w], axis=2)        # [B,C,h+w]
    t = jnp.einsum('rc,bcn->brn', params['ca_w1'], y1)
    scale = params['ca_bn_gamma'] / jnp.sqrt(params['ca_bn_var'] + eps)
    shift = params['ca_bn_beta'] - params['ca_bn_mean'] * scale
    t = t * scale[None, :, None] + shift[None, :, None]
    t = jnp.where(t >= 0, t, 0.1 * t)
    att = jax.nn.sigmoid(jnp.einsum('cr,brn->bcn', params['ca_w2'], t))
    a_h = att[:, :, :H]                               # [B,C,1,h] after conv_sigmoid
    a_w = att[:, :, H:]                               # [B,C,1,w]
    gate = (a_h * a_w)[:, :, None, :]                 # expand_as: broadcast over rows
    return x1 * gate, x2 * gate                       # (y2 branch of the forward is dead)


if __name__ == "__main__":
    B, C, R, L = 2, 4, 2, 16
    key = jax.random.PRNGKey(0)
    kx1, kx2, kp = jax.random.split(key, 3)
    x1 = jax.random.normal(kx1, (B, C, L, L), jnp.float32)
    x2 = jax.random.normal(kx2, (B, C, L, L), jnp.float32)
    params = init_params(kp, C, R)

    out1, out2 = jax.jit(ca_block_forward)(x1, x2, params)
    out1, out2 = jax.block_until_ready((out1, out2))
    assert out1.shape == (B, C, L, L) and out2.shape == (B, C, L, L)

    ref1, ref2 = reference_forward(x1, x2, params)
    max_err = max(float(jnp.max(jnp.abs(out1 - ref1))),
                  float(jnp.max(jnp.abs(out2 - ref2))))
    if max_err > 2e-3:
        raise AssertionError(f"mismatch vs reference, max abs err = {max_err}")
    print("KERNEL_OK")
</pallas_src>

<mosaic_0001>
module attributes {stable_mosaic.version = 11 : i64} {
  func.func @_reduce_kernel(%arg0: i32, %arg1: i32, %arg2: memref<1x4x16x16xf32, #tpu.memory_space<vmem>>, %arg3: memref<1x1x4x16xf32, #tpu.memory_space<vmem>>, %arg4: memref<1x4x16xf32, #tpu.memory_space<vmem>>) attributes {dimension_semantics = [#tpu.dimension_semantics<parallel>, #tpu.dimension_semantics<arbitrary>], iteration_bounds = array<i64: 2, 1>, scalar_prefetch = 0 : i64, scratch_operands = 0 : i64, tpu.core_type = #tpu.core_type<tc>, window_params = [{transform_indices = @transform_0, window_bounds = array<i64: 1, 4, 16, 16>}, {transform_indices = @transform_1, window_bounds = array<i64: 1, 1, 4, 16>}, {transform_indices = @transform_2, window_bounds = array<i64: 1, 4, 16>}]} {
    %c0 = arith.constant 0 : index
    %c0_0 = arith.constant 0 : index
    %c0_1 = arith.constant 0 : index
    %c0_2 = arith.constant 0 : index
    %0 = vector.load %arg2[%c0, %c0_0, %c0_1, %c0_2] : memref<1x4x16x16xf32, #tpu.memory_space<vmem>>, vector<1x4x16x16xf32>
    %1 = vector.shape_cast %0 : vector<1x4x16x16xf32> to vector<4x16x16xf32>
    %cst = arith.constant dense<0.000000e+00> : vector<4x16xf32>
    %2 = vector.multi_reduction <add>, %1, %cst [2] : vector<4x16x16xf32> to vector<4x16xf32>
    %c0_3 = arith.constant 0 : index
    %c0_4 = arith.constant 0 : index
    %c0_5 = arith.constant 0 : index
    %c0_6 = arith.constant 0 : index
    %3 = vector.load %arg3[%c0_3, %c0_4, %c0_5, %c0_6] : memref<1x1x4x16xf32, #tpu.memory_space<vmem>>, vector<1x1x4x16xf32>
    %4 = vector.shape_cast %3 : vector<1x1x4x16xf32> to vector<4x16xf32>
    %5 = vector.shape_cast %2 : vector<4x16xf32> to vector<1x1x4x16xf32>
    tpu.vector_store %arg3[%c0_3, %c0_4, %c0_5, %c0_6], %5 {strides = array<i32>} : memref<1x1x4x16xf32, #tpu.memory_space<vmem>>, vector<1x1x4x16xf32>,
    %c0_i32 = arith.constant 0 : i32
    %6 = arith.cmpi eq, %arg1, %c0_i32 : i32
    %7 = arith.extui %6 : i1 to i32
    %c0_i32_7 = arith.constant 0 : i32
    %8 = arith.cmpi ne, %7, %c0_i32_7 : i32
    scf.if %8 {
      %cst_15 = arith.constant 0.000000e+00 : f32
      %16 = vector.broadcast %cst_15 : f32 to vector<1x4x16xf32>
      %c0_16 = arith.constant 0 : index
      %c0_17 = arith.constant 0 : index
      %c0_18 = arith.constant 0 : index
      %17 = vector.load %arg4[%c0_16, %c0_17, %c0_18] : memref<1x4x16xf32, #tpu.memory_space<vmem>>, vector<1x4x16xf32>
      tpu.vector_store %arg4[%c0_16, %c0_17, %c0_18], %16 {strides = array<i32>} : memref<1x4x16xf32, #tpu.memory_space<vmem>>, vector<1x4x16xf32>,
    } else {
    }
    %c0_8 = arith.constant 0 : index
    %c0_9 = arith.constant 0 : index
    %c0_10 = arith.constant 0 : index
    %9 = vector.load %arg4[%c0_8, %c0_9, %c0_10] : memref<1x4x16xf32, #tpu.memory_space<vmem>>, vector<1x4x16xf32>
    %10 = vector.shape_cast %9 : vector<1x4x16xf32> to vector<4x16xf32>
    %cst_11 = arith.constant dense<0.000000e+00> : vector<4x16xf32>
    %11 = vector.multi_reduction <add>, %1, %cst_11 [1] : vector<4x16x16xf32> to vector<4x16xf32>
    %12 = arith.addf %10, %11 : vector<4x16xf32>
    %c0_12 = arith.constant 0 : index
    %c0_13 = arith.constant 0 : index
    %c0_14 = arith.constant 0 : index
    %13 = vector.load %arg4[%c0_12, %c0_13, %c0_14] : memref<1x4x16xf32, #tpu.memory_space<vmem>>, vector<1x4x16xf32>
    %14 = vector.shape_cast %13 : vector<1x4x16xf32> to vector<4x16xf32>
    %15 = vector.shape_cast %12 : vector<4x16xf32> to vector<1x4x16xf32>
    tpu.vector_store %arg4[%c0_12, %c0_13, %c0_14], %15 {strides = array<i32>} : memref<1x4x16xf32, #tpu.memory_space<vmem>>, vector<1x4x16xf32>,
    return
  }
  func.func @transform_0(%arg0: i32, %arg1: i32) -> (i32, i32, i32, i32) {
    %c0_i32 = arith.constant 0 : i32
    %c0_i32_0 = arith.constant 0 : i32
    %c0_i32_1 = arith.constant 0 : i32
    return %arg0, %c0_i32, %arg1, %c0_i32_0 : i32, i32, i32, i32
  }
  func.func @transform_1(%arg0: i32, %arg1: i32) -> (i32, i32, i32, i32) {
    %c0_i32 = arith.constant 0 : i32
    %c0_i32_0 = arith.constant 0 : i32
    %c0_i32_1 = arith.constant 0 : i32
    return %arg0, %arg1, %c0_i32, %c0_i32_0 : i32, i32, i32, i32
  }
  func.func @transform_2(%arg0: i32, %arg1: i32) -> (i32, i32, i32) {
    %c0_i32 = arith.constant 0 : i32
    %c0_i32_0 = arith.constant 0 : i32
    %c0_i32_1 = arith.constant 0 : i32
    return %arg0, %c0_i32, %c0_i32_0 : i32, i32, i32
  }
}

module attributes {stable_mosaic.version = 11 : i64} {
  func.func @_gate_kernel(%arg0: i32, %arg1: i32, %arg2: memref<1x4x16x16xf32, #tpu.memory_space<vmem>>, %arg3: memref<1x4x16x16xf32, #tpu.memory_space<vmem>>, %arg4: memref<1x4x16xf32, #tpu.memory_space<vmem>>, %arg5: memref<1x4x16x16xf32, #tpu.memory_space<vmem>>, %arg6: memref<1x4x16x16xf32, #tpu.memory_space<vmem>>) attributes {dimension_semantics = [#tpu.dimension_semantics<parallel>, #tpu.dimension_semantics<parallel>], iteration_bounds = array<i64: 2, 1>, scalar_prefetch = 0 : i64, scratch_operands = 0 : i64, tpu.core_type = #tpu.core_type<tc>, window_params = [{transform_indices = @transform_0, window_bounds = array<i64: 1, 4, 16, 16>}, {transform_indices = @transform_1, window_bounds = array<i64: 1, 4, 16, 16>}, {transform_indices = @transform_2, window_bounds = array<i64: 1, 4, 16>}, {transform_indices = @transform_3, window_bounds = array<i64: 1, 4, 16, 16>}, {transform_indices = @transform_4, window_bounds = array<i64: 1, 4, 16, 16>}]} {
    %c0 = arith.constant 0 : index
    %c0_0 = arith.constant 0 : index
    %c0_1 = arith.constant 0 : index
    %0 = vector.load %arg4[%c0, %c0_0, %c0_1] : memref<1x4x16xf32, #tpu.memory_space<vmem>>, vector<1x4x16xf32>
    %1 = vector.shape_cast %0 : vector<1x4x16xf32> to vector<1x4x1x16xf32>
    %c0_2 = arith.constant 0 : index
    %c0_3 = arith.constant 0 : index
    %c0_4 = arith.constant 0 : index
    %c0_5 = arith.constant 0 : index
    %2 = vector.load %arg2[%c0_2, %c0_3, %c0_4, %c0_5] : memref<1x4x16x16xf32, #tpu.memory_space<vmem>>, vector<1x4x16x16xf32>
    %3 = vector.broadcast %1 : vector<1x4x1x16xf32> to vector<1x4x16x16xf32>
    %4 = arith.mulf %2, %3 : vector<1x4x16x16xf32>
    %c0_6 = arith.constant 0 : index
    %c0_7 = arith.constant 0 : index
    %c0_8 = arith.constant 0 : index
    %c0_9 = arith.constant 0 : index
    %5 = vector.load %arg5[%c0_6, %c0_7, %c0_8, %c0_9] : memref<1x4x16x16xf32, #tpu.memory_space<vmem>>, vector<1x4x16x16xf32>
    tpu.vector_store %arg5[%c0_6, %c0_7, %c0_8, %c0_9], %4 {strides = array<i32>} : memref<1x4x16x16xf32, #tpu.memory_space<vmem>>, vector<1x4x16x16xf32>,
    %c0_10 = arith.constant 0 : index
    %c0_11 = arith.constant 0 : index
    %c0_12 = arith.constant 0 : index
    %c0_13 = arith.constant 0 : index
    %6 = vector.load %arg3[%c0_10, %c0_11, %c0_12, %c0_13] : memref<1x4x16x16xf32, #tpu.memory_space<vmem>>, vector<1x4x16x16xf32>
    %7 = vector.broadcast %1 : vector<1x4x1x16xf32> to vector<1x4x16x16xf32>
    %8 = arith.mulf %6, %7 : vector<1x4x16x16xf32>
    %c0_14 = arith.constant 0 : index
    %c0_15 = arith.constant 0 : index
    %c0_16 = arith.constant 0 : index
    %c0_17 = arith.constant 0 : index
    %9 = vector.load %arg6[%c0_14, %c0_15, %c0_16, %c0_17] : memref<1x4x16x16xf32, #tpu.memory_space<vmem>>, vector<1x4x16x16xf32>
    tpu.vector_store %arg6[%c0_14, %c0_15, %c0_16, %c0_17], %8 {strides = array<i32>} : memref<1x4x16x16xf32, #tpu.memory_space<vmem>>, vector<1x4x16x16xf32>,
    return
  }
  func.func @transform_0(%arg0: i32, %arg1: i32) -> (i32, i32, i32, i32) {
    %c0_i32 = arith.constant 0 : i32
    %c0_i32_0 = arith.constant 0 : i32
    %c0_i32_1 = arith.constant 0 : i32
    return %arg0, %c0_i32, %arg1, %c0_i32_0 : i32, i32, i32, i32
  }
  func.func @transform_1(%arg0: i32, %arg1: i32) -> (i32, i32, i32, i32) {
    %c0_i32 = arith.constant 0 : i32
    %c0_i32_0 = arith.constant 0 : i32
    %c0_i32_1 = arith.constant 0 : i32
    return %arg0, %c0_i32, %arg1, %c0_i32_0 : i32, i32, i32, i32
  }
  func.func @transform_2(%arg0: i32, %arg1: i32) -> (i32, i32, i32) {
    %c0_i32 = arith.constant 0 : i32
    %c0_i32_0 = arith.constant 0 : i32
    %c0_i32_1 = arith.constant 0 : i32
    return %arg0, %c0_i32, %c0_i32_0 : i32, i32, i32
  }
  func.func @transform_3(%arg0: i32, %arg1: i32) -> (i32, i32, i32, i32) {
    %c0_i32 = arith.constant 0 : i32
    %c0_i32_0 = arith.constant 0 : i32
    %c0_i32_1 = arith.constant 0 : i32
    return %arg0, %c0_i32, %arg1, %c0_i32_0 : i32, i32, i32, i32
  }
  func.func @transform_4(%arg0: i32, %arg1: i32) -> (i32, i32, i32, i32) {
    %c0_i32 = arith.constant 0 : i32
    %c0_i32_0 = arith.constant 0 : i32
    %c0_i32_1 = arith.constant 0 : i32
    return %arg0, %c0_i32, %arg1, %c0_i32_0 : i32, i32, i32, i32
  }
}

</mosaic_0001>

<llo_original>
// kernel: ca_block_forward.2
$region0: #{ca_block_forward.2}
  #allocation0 [shape = 'u32[]', space=smem, size = 0x4, offset = 0x4, fixed_abs, tag = 'smem constant byte address 0x4 - core index']
  #allocation1 [shape = 'u32[144,128]{1,0:T(1,128)}', space=vmem, size = 0x12000, scoped, tag = 'internal scratch']
  %s0 = inlined_call_operand.hbm [shape: f32[2,4,16,16], index: 0, kind: input, shape index: {}]
  %s1 = inlined_call_operand.vmem [shape: f32[2,1,4,16], index: 1, kind: output, shape index: {0}]
  %s2 = inlined_call_operand.vmem [shape: f32[2,4,16], index: 2, kind: output, shape index: {1}]
  %3 = xla_tuple %s1, %s2
  %s4 = sld [smem:[#allocation0]]
  $region53: #{ca_block_forward.2} parent=0
    _
  %s6 = ssub.s32 1, %s4
  %s7 = scalar_select 0, %s6, %s4
  $region1: #{ca_block_forward.2} parent=0
    #allocation2 [shape = 'u8[65536]{0}', space=vmem, size = 0x10000, scoped, tag = 'input window, operand 0']
    #allocation3 [shape = 's32[2]{0}', space=sflag, size = 0x8, scoped, tag = 'scoped memory for ca_block_forward.2']
    %8 = vsyncpa [#allocation3], 0
    %s9 = scalar_lea.sflag [#allocation3], 1
    %10 = vsyncpa %s9, 0
    loop: start=0, step=1, limit=4
    $region2: #{ca_block_forward.2} parent=1 // loop_pre_header
      _
    $region3: #{ca_block_forward.2} parent=1 // loop_header
      %s12 = sphi 0, %s16
      %p13 = scmp.ge.s32.totalorder %s12, 4
      %s19 = sphi 0, %s31
      %s20 = sphi 0, %s27
      %s21 = sphi 0, %s19
      %s22 = sphi 0, %s20
      %s23 = sphi 0, %s21
      %s24 = sphi 0, %s22
      %s36 = sphi 0, %s38
      %s39 = sphi 0, %s36
      %s40 = sphi 0, %s39
      %s56 = sphi 0, %s40
      %s64 = sphi 0, %s66
      %s67 = sphi 0, %s64
      %s68 = sphi 0, %s67
      %s84 = sphi 0, %s68
      %s90 = sphi 0, %s92
      %s93 = sphi 0, %s90
      %s94 = sphi 0, %s93
      %s110 = sphi 0, %s94
    $region4: #{ca_block_forward.2} parent=1 // loop_header_branch
      %15 = sbr.rel (%p13) target = $region8
    $region5: #{ca_block_forward.2} parent=1 // loop_body
      %s17 = ssub.s32 %s12, 1
      %s18 = ssub.s32 %s12, 2
      %s25 = sadd.s32 1, %s20
      %p26 = scmp.ge.s32.totalorder %s25, 1
      %s27 = scalar_select %p26, 0, %s25
      %s28 = sadd.s32 1, %s19
      %s29 = scalar_select %p26, %s28, %s19
      %p30 = scmp.ge.s32.totalorder %s29, 2
      %s31 = scalar_select %p30, 0, %s29
      %s32 = ssub.s32 %s19, %s31
      %s33 = ssub.s32 %s20, %s27
      %s34 = sor.u32 %s32, %s33
      %p35 = scmp.eq.s32.totalorder %s34, 0
      %s37 = sadd.s32 %s36, 1
      %s38 = scalar_select %p35, %s36, %s37
      %p41 = pneg %p35
      %p42 = scmp.eq.s32.totalorder %s12, 1
      %p43 = por %p41, %p42
      %p44 = scmp.ne.s32.totalorder %s36, %s39
      %p45 = scmp.eq.s32.totalorder %s12, 0
      %p46 = por %p44, %p45
      %p47 = scmp.ne.s32.totalorder %s36, %s39
      %p48 = scmp.eq.s32.totalorder %s17, 1
      %p49 = por %p47, %p48
      %p50 = scmp.ne.s32.totalorder %s39, %s40
      %p51 = scmp.eq.s32.totalorder %s17, 0
      %p52 = por %p50, %p51
      %p53 = scmp.ne.s32.totalorder %s39, %s40
      %p54 = scmp.eq.s32.totalorder %s18, 1
      %p55 = por %p53, %p54
      %p57 = scmp.ne.s32.totalorder %s40, %s56
      %p58 = scmp.eq.s32.totalorder %s18, 0
      %p59 = por %p57, %p58
      %s60 = ssub.s32 %s19, %s31
      %s61 = ssub.s32 %s20, %s27
      %s62 = sor.u32 %s60, %s61
      %p63 = scmp.eq.s32.totalorder %s62, 0
      %s65 = sadd.s32 %s64, 1
      %s66 = scalar_select %p63, %s64, %s65
      %p69 = pneg %p63
      %p70 = scmp.eq.s32.totalorder %s12, 1
      %p71 = por %p69, %p70
      %p72 = scmp.ne.s32.totalorder %s64, %s67
      %p73 = scmp.eq.s32.totalorder %s12, 0
      %p74 = por %p72, %p73
      %p75 = scmp.ne.s32.totalorder %s64, %s67
      %p76 = scmp.eq.s32.totalorder %s17, 1
      %p77 = por %p75, %p76
      %p78 = scmp.ne.s32.totalorder %s67, %s68
      %p79 = scmp.eq.s32.totalorder %s17, 0
      %p80 = por %p78, %p79
      %p81 = scmp.ne.s32.totalorder %s67, %s68
      %p82 = scmp.eq.s32.totalorder %s18, 1
      %p83 = por %p81, %p82
      %p85 = scmp.ne.s32.totalorder %s68, %s84
      %p86 = scmp.eq.s32.totalorder %s18, 0
      %p87 = por %p85, %p86
      %s88 = ssub.s32 %s19, %s31
      %p89 = scmp.eq.s32.totalorder %s88, 0
      %s91 = sadd.s32 %s90, 1
      %s92 = scalar_select %p89, %s90, %s91
      %p95 = pneg %p89
      %p96 = scmp.eq.s32.totalorder %s12, 1
      %p97 = por %p95, %p96
      %p98 = scmp.ne.s32.totalorder %s90, %s93
      %p99 = scmp.eq.s32.totalorder %s12, 0
      %p100 = por %p98, %p99
      %p101 = scmp.ne.s32.totalorder %s90, %s93
      %p102 = scmp.eq.s32.totalorder %s17, 1
      %p103 = por %p101, %p102
      %p104 = scmp.ne.s32.totalorder %s93, %s94
      %p105 = scmp.eq.s32.totalorder %s17, 0
      %p106 = por %p104, %p105
      %p107 = scmp.ne.s32.totalorder %s93, %s94
      %p108 = scmp.eq.s32.totalorder %s18, 1
      %p109 = por %p107, %p108
      %p111 = scmp.ne.s32.totalorder %s94, %s110
      %p112 = scmp.eq.s32.totalorder %s18, 0
      %p113 = por %p111, %p112
      %p114 = scmp.le.s32.totalorder 1, %s12
      %p115 = scmp.lt.s32.totalorder %s12, 3
      %p116 = pnand %p114, %p115
      %p117 = pneg %p116
      // Predicated region
      $region9: #{ca_block_forward.2} parent=5 // pred_check
        _
      $region10: #{ca_block_forward.2} parent=5 // pred_check_branch
        %119 = sbr.rel (%p116) target = $region12
      $region11: #{ca_block_forward.2} parent=5 // pred_region
        %s120 = ssub.s32 %s12, 1
      $region12: #{ca_block_forward.2} parent=5 // pred_fallthru
        _
      %p121 = scmp.lt.s32.totalorder %s12, 2
      // Predicated region
      $region13: #{ca_block_forward.2} parent=5 // pred_check
        %p122 = pneg %p121
      $region14: #{ca_block_forward.2} parent=5 // pred_check_branch
        %124 = sbr.rel (%p122) target = $region16
      $region15: #{ca_block_forward.2} parent=5 // pred_region
        // Predicated region
        $region17: #{ca_block_forward.2} parent=15 // pred_check
          %p125 = pneg %p46
        $region18: #{ca_block_forward.2} parent=15 // pred_check_branch
          %127 = sbr.rel (%p125) target = $region20
        $region19: #{ca_block_forward.2} parent=15 // pred_region
          %s128 = sand.u32 %s36, 1
          %s129 = scalar_lea.sflag [#allocation3], %s128
          %s130 = sand.u32 %s36, 1
          %s131 = smul.addr %s130, 64
          %s132 = scalar_lea.vmem [#allocation2], %s131
          %s133 = smul.u32 2, %s20
          %s135 = ssub.s32 1024, 1024
          %136 = vsyncadd %s129, %s135
          %s137 = smul.addr %s19, 8
          %s138 = sadd.s32 %s133, %s137
          %s139 = smul.addr %s138, 128
          %s140 = scalar_lea.hbm %s0, %s139
          %s141 = sshll.u32 %s132, 4
          %s142 = int_to_ptr.vmem [resolvable:$true] %s141
          %147 = dma.hbm_to_vmem [thread:$0]  %s140, 1024, %s142, %s129, 128, 128, 8
        $region20: #{ca_block_forward.2} parent=15 // pred_fallthru
          _
      $region16: #{ca_block_forward.2} parent=5 // pred_fallthru
        _
      %p148 = scmp.le.s32.totalorder 1, %s12
      %p149 = scmp.lt.s32.totalorder %s12, 3
      %p150 = pnand %p148, %p149
      %p151 = pneg %p150
      // Predicated region
      $region21: #{ca_block_forward.2} parent=5 // pred_check
        _
      $region22: #{ca_block_forward.2} parent=5 // pred_check_branch
        %153 = sbr.rel (%p150) target = $region24
      $region23: #{ca_block_forward.2} parent=5 // pred_region
        %s154 = ssub.s32 %s12, 1
        %s155 = sand.u32 %s39, 1
        %s156 = scalar_lea.sflag [#allocation3], %s155
        %s157 = sand.u32 %s39, 1
        %s158 = smul.addr %s157, 64
        %s159 = scalar_lea.vmem [#allocation2], %s158
        // Predicated region
        $region25: #{ca_block_forward.2} parent=23 // pred_check
          %p160 = pneg %p52
        $region26: #{ca_block_forward.2} parent=23 // pred_check_branch
          %162 = sbr.rel (%p160) target = $region28
        $region27: #{ca_block_forward.2} parent=23 // pred_region
          %163 = dma.done %s156, 1024
        $region28: #{ca_block_forward.2} parent=23 // pred_fallthru
          _
        %s164 = sand.u32 %s39, 1
        %s165 = scalar_lea.sflag [#allocation3], %s164
        %s166 = sand.u32 %s39, 1
        %s167 = smul.addr %s166, 64
        %s168 = scalar_lea.vmem [#allocation2], %s167
        %p169 = pneg %p52
        %p170 = pneg %p49
        %p171 = pneg %p80
        %p172 = pneg %p77
        %p173 = scmp.lt.s32.totalorder %s21, 1
        %s174 = scalar_select %p173, %s21, 1
        %p175 = scmp.lt.s32.totalorder %s22, 0
        %s176 = scalar_select %p175, %s22, 0
        %s177 = sadd.s32 %s176, %s174
        %s178 = smul.addr %s177, 4
        %s179 = scalar_lea.vmem %s1, %s178
        %p180 = pneg %p106
        %p181 = pneg %p103
        %p182 = scmp.lt.s32.totalorder %s21, 1
        %s183 = scalar_select %p182, %s21, 1
        %s184 = smul.addr %s183, 4
        %s185 = scalar_lea.vmem %s2, %s184
        %s186 = smul.u32 2, %s22
        %p187 = scmp.lt.s32.totalorder %s21, 1
        %s188 = scalar_select %p187, %s21, 1
        %p189 = scmp.lt.s32.totalorder %s22, 0
        %s190 = scalar_select %p189, %s22, 0
        %s191 = sadd.s32 %s190, %s188
        %s192 = smul.addr %s191, 4
        %s193 = scalar_lea.vmem %s1, %s192
        %p194 = scmp.lt.s32.totalorder %s21, 1
        %s195 = scalar_select %p194, %s21, 1
        %s196 = smul.addr %s195, 4
        %s197 = scalar_lea.vmem %s2, %s196
        %v198 = vld [vmem:[%s159] sm:$0xff]
        %v199 = vld [vmem:[%s159 + $0x8] sm:$0xff]
        %v200 = vld [vmem:[%s159 + $0x10] sm:$0xff]
        %v201 = vld [vmem:[%s159 + $0x18] sm:$0xff]
        %v202 = vld [vmem:[%s159 + $0x20] sm:$0xff]
        %v203 = vld [vmem:[%s159 + $0x28] sm:$0xff]
        %v204 = vld [vmem:[%s159 + $0x30] sm:$0xff]
        %v205 = vld [vmem:[%s159 + $0x38] sm:$0xff]
        %vm206 = vcmask 130048
        %v207 = vsel %vm206, %v198, 0.0
        %208 = vadd.xlane.f32.xlu0 %v207
        %v209 = vpop.xlane.xlu0 %208
        %v210 = vsel %vm206, %v199, 0.0
        %211 = vadd.xlane.f32.xlu0 %v210
        %v212 = vpop.xlane.xlu0 %211
        %v213 = vsel %vm206, %v200, 0.0
        %214 = vadd.xlane.f32.xlu0 %v213
        %v215 = vpop.xlane.xlu0 %214
        %v216 = vsel %vm206, %v201, 0.0
        %217 = vadd.xlane.f32.xlu0 %v216
        %v218 = vpop.xlane.xlu0 %217
        %v219 = vsel %vm206, %v202, 0.0
        %220 = vadd.xlane.f32.xlu0 %v219
        %v221 = vpop.xlane.xlu0 %220
        %v222 = vsel %vm206, %v203, 0.0
        %223 = vadd.xlane.f32.xlu0 %v222
        %v224 = vpop.xlane.xlu0 %223
        %v225 = vsel %vm206, %v204, 0.0
        %226 = vadd.xlane.f32.xlu0 %v225
        %v227 = vpop.xlane.xlu0 %226
        %v228 = vsel %vm206, %v205, 0.0
        %229 = vadd.xlane.f32.xlu0 %v228
        %v230 = vpop.xlane.xlu0 %229
        %v239 = vlaneseq
        %v240 = vand.u32 %v239, 127
        %v241 = vlaneseq
        %v242 = vshrl.u32 %v241, 7
        %v243 = vsub.s32 %v240, %v242
        %v244 = vrot.slane %v209, %v243
        %v245 = vadd.s32 %v240, 4294967288
        %v246 = vlaneseq
        %v247 = vshrl.u32 %v246, 7
        %v248 = vsub.s32 %v245, %v247
        %v249 = vrot.slane %v212, %v248
        %vm250 = vcmask 130112
        %v251 = vsel %vm250, %v249, %v244
        %v252 = vlaneseq
        %v253 = vshrl.u32 %v252, 7
        %v254 = vsub.s32 %v240, %v253
        %v255 = vrot.slane %v215, %v254
        %v256 = vlaneseq
        %v257 = vshrl.u32 %v256, 7
        %v258 = vsub.s32 %v245, %v257
        %v259 = vrot.slane %v218, %v258
        %v260 = vsel %vm250, %v259, %v255
        %v261 = vlaneseq
        %v262 = vshrl.u32 %v261, 7
        %v263 = vsub.s32 %v240, %v262
        %v264 = vrot.slane %v221, %v263
        %v265 = vlaneseq
        %v266 = vshrl.u32 %v265, 7
        %v267 = vsub.s32 %v245, %v266
        %v268 = vrot.slane %v224, %v267
        %v269 = vsel %vm250, %v268, %v264
        %v270 = vlaneseq
        %v271 = vshrl.u32 %v270, 7
        %v272 = vsub.s32 %v240, %v271
        %v273 = vrot.slane %v227, %v272
        %v274 = vlaneseq
        %v275 = vshrl.u32 %v274, 7
        %v276 = vsub.s32 %v245, %v275
        %v277 = vrot.slane %v230, %v276
        %v278 = vsel %vm250, %v277, %v273
        %vm279 = vcmask 1041409
        %v280 = vsel %vm279, %v260, %v251
        %vm281 = vcmask 1042434
        %v282 = vsel %vm281, %v269, %v280
        %vm283 = vcmask 1043459
        %v284 = vsel %vm283, %v278, %v282
        %vm286 = vcmask 125952
        %287 = vst.msk [vmem:[%s193] sm:$0xf] %vm286, %v284
        %p288 = scmp.eq.s32.totalorder %s22, 0
        // Predicated region
        $region29: #{ca_block_forward.2} parent=23 // pred_check
          %p289 = pneg %p288
        $region30: #{ca_block_forward.2} parent=23 // pred_check_branch
          %291 = sbr.rel (%p289) target = $region32
        $region31: #{ca_block_forward.2} parent=23 // pred_region
          %292 = vst.msk [vmem:[%s197] sm:$0xf] %vm286, 0.0
        $region32: #{ca_block_forward.2} parent=23 // pred_fallthru
          _
        %v293 = vld [vmem:[%s197] sm:$0xf]
        %v294 = vadd.f32 %v207, %v210
        %v295 = vrot.slane %v294, 4
        %v296 = vadd.f32 %v294, %v295
        %v297 = vrot.slane %v296, 2
        %v298 = vadd.f32 %v296, %v297
        %v299 = vrot.slane %v298, 1
        %v300 = vadd.f32 %v298, %v299
        %v301 = vadd.f32 %v213, %v216
        %v302 = vrot.slane %v301, 4
        %v303 = vadd.f32 %v301, %v302
        %v304 = vrot.slane %v303, 2
        %v305 = vadd.f32 %v303, %v304
        %v306 = vrot.slane %v305, 1
        %v307 = vadd.f32 %v305, %v306
        %v308 = vadd.f32 %v219, %v222
        %v309 = vrot.slane %v308, 4
        %v310 = vadd.f32 %v308, %v309
        %v311 = vrot.slane %v310, 2
        %v312 = vadd.f32 %v310, %v311
        %v313 = vrot.slane %v312, 1
        %v314 = vadd.f32 %v312, %v313
        %v315 = vadd.f32 %v225, %v228
        %v316 = vrot.slane %v315, 4
        %v317 = vadd.f32 %v315, %v316
        %v318 = vrot.slane %v317, 2
        %v319 = vadd.f32 %v317, %v318
        %v320 = vrot.slane %v319, 1
        %v321 = vadd.f32 %v319, %v320
        %v326 = vsel %vm279, %v307, %v300
        %v327 = vsel %vm281, %v314, %v326
        %v328 = vsel %vm283, %v321, %v327
        %v330 = vadd.f32 %v293, %v328
        %331 = vst.msk [vmem:[%s197] sm:$0xf] %vm286, %v330
        %p332 = scmp.lt.s32.totalorder %s21, 1
        %s333 = scalar_select %p332, %s21, 1
        %p334 = scmp.lt.s32.totalorder %s22, 0
        %s335 = scalar_select %p334, %s22, 0
        %s336 = sadd.s32 %s335, %s333
        %s337 = smul.addr %s336, 4
        %s338 = scalar_lea.vmem %s1, %s337
        %p339 = scmp.lt.s32.totalorder %s21, 1
        %s340 = scalar_select %p339, %s21, 1
        %s341 = smul.addr %s340, 4
        %s342 = scalar_lea.vmem %s2, %s341
        // Predicated region
        $region33: #{ca_block_forward.2} parent=23 // pred_check
          %p343 = pneg %p77
        $region34: #{ca_block_forward.2} parent=23 // pred_check_branch
          %345 = sbr.rel (%p343) target = $region36
        $region35: #{ca_block_forward.2} parent=23 // pred_region
          _
        $region36: #{ca_block_forward.2} parent=23 // pred_fallthru
          _
        // Predicated region
        $region37: #{ca_block_forward.2} parent=23 // pred_check
          %p346 = pneg %p103
        $region38: #{ca_block_forward.2} parent=23 // pred_check_branch
          %348 = sbr.rel (%p346) target = $region40
        $region39: #{ca_block_forward.2} parent=23 // pred_region
          _
        $region40: #{ca_block_forward.2} parent=23 // pred_fallthru
          _
      $region24: #{ca_block_forward.2} parent=5 // pred_fallthru
        _
      %p349 = scmp.le.s32.totalorder 2, %s12
      // Predicated region
      $region41: #{ca_block_forward.2} parent=5 // pred_check
        %p350 = pneg %p349
      $region42: #{ca_block_forward.2} parent=5 // pred_check_branch
        %352 = sbr.rel (%p350) target = $region44
      $region43: #{ca_block_forward.2} parent=5 // pred_region
        %s353 = ssub.s32 %s12, 2
        // Predicated region
        $region45: #{ca_block_forward.2} parent=43 // pred_check
          %p354 = pneg %p83
        $region46: #{ca_block_forward.2} parent=43 // pred_check_branch
          %356 = sbr.rel (%p354) target = $region48
        $region47: #{ca_block_forward.2} parent=43 // pred_region
          %p357 = scmp.lt.s32.totalorder %s23, 1
          %s358 = scalar_select %p357, %s23, 1
          %p359 = scmp.lt.s32.totalorder %s24, 0
          %s360 = scalar_select %p359, %s24, 0
          %s361 = sadd.s32 %s360, %s358
          %s362 = smul.addr %s361, 4
          %s363 = scalar_lea.vmem %s1, %s362
        $region48: #{ca_block_forward.2} parent=43 // pred_fallthru
          _
        // Predicated region
        $region49: #{ca_block_forward.2} parent=43 // pred_check
          %p364 = pneg %p109
        $region50: #{ca_block_forward.2} parent=43 // pred_check_branch
          %366 = sbr.rel (%p364) target = $region52
        $region51: #{ca_block_forward.2} parent=43 // pred_region
          %p367 = scmp.lt.s32.totalorder %s23, 1
          %s368 = scalar_select %p367, %s23, 1
          %s369 = smul.addr %s368, 4
          %s370 = scalar_lea.vmem %s2, %s369
        $region52: #{ca_block_forward.2} parent=43 // pred_fallthru
          _
      $region44: #{ca_block_forward.2} parent=5 // pred_fallthru
        _
    $region6: #{ca_block_forward.2} parent=1 // loop_footer
      %s16 = sadd.s32 1, %s12
    $region7: #{ca_block_forward.2} parent=1 // loop_footer_branch
      %11 = sbr.rel target = $region3
    $region8: #{ca_block_forward.2} parent=1 // loop_exit
      _
    %371 = vsyncpa [#allocation3], 1
    %s372 = scalar_lea.sflag [#allocation3], 1
    %373 = vsyncpa %s372, 1

// kernel: ca_block_forward.3
$region0: #{ca_block_forward.3}
  #allocation0 [shape = 'u32[]', space=smem, size = 0x4, offset = 0x4, fixed_abs, tag = 'smem constant byte address 0x4 - core index']
  #allocation1 [shape = 'u32[144,128]{1,0:T(1,128)}', space=vmem, size = 0x12000, scoped, tag = 'internal scratch']
  %s0 = inlined_call_operand.vmem [shape: f32[2,4,16,16], index: 0, kind: input, shape index: {}]
  %s1 = inlined_call_operand.vmem [shape: f32[2,4,16,16], index: 1, kind: input, shape index: {}]
  %s2 = inlined_call_operand.vmem [shape: f32[2,4,16], index: 2, kind: input, shape index: {}]
  %s3 = inlined_call_operand.hbm [shape: f32[2,4,16,16], index: 3, kind: output, shape index: {0}]
  %s4 = inlined_call_operand.hbm [shape: f32[2,4,16,16], index: 4, kind: output, shape index: {1}]
  %5 = xla_tuple %s3, %s4
  %s6 = sld [smem:[#allocation0]]
  $region53: #{ca_block_forward.3} parent=0
    _
  %s8 = ssub.s32 1, %s6
  %s9 = scalar_select 0, %s8, %s6
  $region1: #{ca_block_forward.3} parent=0
    #allocation2 [shape = 'u8[65536]{0}', space=vmem, size = 0x10000, scoped, tag = 'output window, operand 0']
    #allocation3 [shape = 's32[2]{0}', space=sflag, size = 0x8, scoped, tag = 'scoped memory for ca_block_forward.3']
    #allocation4 [shape = 'u8[65536]{0}', space=vmem, size = 0x10000, scoped, tag = 'output window, operand 1']
    #allocation5 [shape = 's32[2]{0}', space=sflag, size = 0x8, scoped, tag = 'scoped memory for ca_block_forward.3']
    %10 = vsyncpa [#allocation3], 0
    %s11 = scalar_lea.sflag [#allocation3], 1
    %12 = vsyncpa %s11, 0
    %13 = vsyncpa [#allocation5], 0
    %s14 = scalar_lea.sflag [#allocation5], 1
    %15 = vsyncpa %s14, 0
    loop: start=0, step=1, limit=4
    $region2: #{ca_block_forward.3} parent=1 // loop_pre_header
      _
    $region3: #{ca_block_forward.3} parent=1 // loop_header
      %s17 = sphi 0, %s21
      %p18 = scmp.ge.s32.totalorder %s17, 4
      %s24 = sphi 0, %s36
      %s25 = sphi 0, %s32
      %s26 = sphi 0, %s24
      %s27 = sphi 0, %s25
      %s28 = sphi 0, %s26
      %s29 = sphi 0, %s27
      %s41 = sphi 0, %s43
      %s44 = sphi 0, %s41
      %s45 = sphi 0, %s44
      %s61 = sphi 0, %s45
      %s69 = sphi 0, %s71
      %s72 = sphi 0, %s69
      %s73 = sphi 0, %s72
      %s89 = sphi 0, %s73
      %s95 = sphi 0, %s97
      %s98 = sphi 0, %s95
      %s99 = sphi 0, %s98
      %s115 = sphi 0, %s99
      %s123 = sphi 0, %s125
      %s126 = sphi 0, %s123
      %s127 = sphi 0, %s126
      %s143 = sphi 0, %s127
      %s151 = sphi 0, %s153
      %s154 = sphi 0, %s151
      %s155 = sphi 0, %s154
      %s171 = sphi 0, %s155
    $region4: #{ca_block_forward.3} parent=1 // loop_header_branch
      %20 = sbr.rel (%p18) target = $region8
    $region5: #{ca_block_forward.3} parent=1 // loop_body
      %s22 = ssub.s32 %s17, 1
      %s23 = ssub.s32 %s17, 2
      %s30 = sadd.s32 1, %s25
      %p31 = scmp.ge.s32.totalorder %s30, 1
      %s32 = scalar_select %p31, 0, %s30
      %s33 = sadd.s32 1, %s24
      %s34 = scalar_select %p31, %s33, %s24
      %p35 = scmp.ge.s32.totalorder %s34, 2
      %s36 = scalar_select %p35, 0, %s34
      %s37 = ssub.s32 %s24, %s36
      %s38 = ssub.s32 %s25, %s32
      %s39 = sor.u32 %s37, %s38
      %p40 = scmp.eq.s32.totalorder %s39, 0
      %s42 = sadd.s32 %s41, 1
      %s43 = scalar_select %p40, %s41, %s42
      %p46 = pneg %p40
      %p47 = scmp.eq.s32.totalorder %s17, 1
      %p48 = por %p46, %p47
      %p49 = scmp.ne.s32.totalorder %s41, %s44
      %p50 = scmp.eq.s32.totalorder %s17, 0
      %p51 = por %p49, %p50
      %p52 = scmp.ne.s32.totalorder %s41, %s44
      %p53 = scmp.eq.s32.totalorder %s22, 1
      %p54 = por %p52, %p53
      %p55 = scmp.ne.s32.totalorder %s44, %s45
      %p56 = scmp.eq.s32.totalorder %s22, 0
      %p57 = por %p55, %p56
      %p58 = scmp.ne.s32.totalorder %s44, %s45
      %p59 = scmp.eq.s32.totalorder %s23, 1
      %p60 = por %p58, %p59
      %p62 = scmp.ne.s32.totalorder %s45, %s61
      %p63 = scmp.eq.s32.totalorder %s23, 0
      %p64 = por %p62, %p63
      %s65 = ssub.s32 %s24, %s36
      %s66 = ssub.s32 %s25, %s32
      %s67 = sor.u32 %s65, %s66
      %p68 = scmp.eq.s32.totalorder %s67, 0
      %s70 = sadd.s32 %s69, 1
      %s71 = scalar_select %p68, %s69, %s70
      %p74 = pneg %p68
      %p75 = scmp.eq.s32.totalorder %s17, 1
      %p76 = por %p74, %p75
      %p77 = scmp.ne.s32.totalorder %s69, %s72
      %p78 = scmp.eq.s32.totalorder %s17, 0
      %p79 = por %p77, %p78
      %p80 = scmp.ne.s32.totalorder %s69, %s72
      %p81 = scmp.eq.s32.totalorder %s22, 1
      %p82 = por %p80, %p81
      %p83 = scmp.ne.s32.totalorder %s72, %s73
      %p84 = scmp.eq.s32.totalorder %s22, 0
      %p85 = por %p83, %p84
      %p86 = scmp.ne.s32.totalorder %s72, %s73
      %p87 = scmp.eq.s32.totalorder %s23, 1
      %p88 = por %p86, %p87
      %p90 = scmp.ne.s32.totalorder %s73, %s89
      %p91 = scmp.eq.s32.totalorder %s23, 0
      %p92 = por %p90, %p91
      %s93 = ssub.s32 %s24, %s36
      %p94 = scmp.eq.s32.totalorder %s93, 0
      %s96 = sadd.s32 %s95, 1
      %s97 = scalar_select %p94, %s95, %s96
      %p100 = pneg %p94
      %p101 = scmp.eq.s32.totalorder %s17, 1
      %p102 = por %p100, %p101
      %p103 = scmp.ne.s32.totalorder %s95, %s98
      %p104 = scmp.eq.s32.totalorder %s17, 0
      %p105 = por %p103, %p104
      %p106 = scmp.ne.s32.totalorder %s95, %s98
      %p107 = scmp.eq.s32.totalorder %s22, 1
      %p108 = por %p106, %p107
      %p109 = scmp.ne.s32.totalorder %s98, %s99
      %p110 = scmp.eq.s32.totalorder %s22, 0
      %p111 = por %p109, %p110
      %p112 = scmp.ne.s32.totalorder %s98, %s99
      %p113 = scmp.eq.s32.totalorder %s23, 1
      %p114 = por %p112, %p113
      %p116 = scmp.ne.s32.totalorder %s99, %s115
      %p117 = scmp.eq.s32.totalorder %s23, 0
      %p118 = por %p116, %p117
      %s119 = ssub.s32 %s24, %s36
      %s120 = ssub.s32 %s25, %s32
      %s121 = sor.u32 %s119, %s120
      %p122 = scmp.eq.s32.totalorder %s121, 0
      %s124 = sadd.s32 %s123, 1
      %s125 = scalar_select %p122, %s123, %s124
      %p128 = pneg %p122
      %p129 = scmp.eq.s32.totalorder %s17, 1
      %p130 = por %p128, %p129
      %p131 = scmp.ne.s32.totalorder %s123, %s126
      %p132 = scmp.eq.s32.totalorder %s17, 0
      %p133 = por %p131, %p132
      %p134 = scmp.ne.s32.totalorder %s123, %s126
      %p135 = scmp.eq.s32.totalorder %s22, 1
      %p136 = por %p134, %p135
      %p137 = scmp.ne.s32.totalorder %s126, %s127
      %p138 = scmp.eq.s32.totalorder %s22, 0
      %p139 = por %p137, %p138
      %p140 = scmp.ne.s32.totalorder %s126, %s127
      %p141 = scmp.eq.s32.totalorder %s23, 1
      %p142 = por %p140, %p141
      %p144 = scmp.ne.s32.totalorder %s127, %s143
      %p145 = scmp.eq.s32.totalorder %s23, 0
      %p146 = por %p144, %p145
      %s147 = ssub.s32 %s24, %s36
      %s148 = ssub.s32 %s25, %s32
      %s149 = sor.u32 %s147, %s148
      %p150 = scmp.eq.s32.totalorder %s149, 0
      %s152 = sadd.s32 %s151, 1
      %s153 = scalar_select %p150, %s151, %s152
      %p156 = pneg %p150
      %p157 = scmp.eq.s32.totalorder %s17, 1
      %p158 = por %p156, %p157
      %p159 = scmp.ne.s32.totalorder %s151, %s154
      %p160 = scmp.eq.s32.totalorder %s17, 0
      %p161 = por %p159, %p160
      %p162 = scmp.ne.s32.totalorder %s151, %s154
      %p163 = scmp.eq.s32.totalorder %s22, 1
      %p164 = por %p162, %p163
      %p165 = scmp.ne.s32.totalorder %s154, %s155
      %p166 = scmp.eq.s32.totalorder %s22, 0
      %p167 = por %p165, %p166
      %p168 = scmp.ne.s32.totalorder %s154, %s155
      %p169 = scmp.eq.s32.totalorder %s23, 1
      %p170 = por %p168, %p169
      %p172 = scmp.ne.s32.totalorder %s155, %s171
      %p173 = scmp.eq.s32.totalorder %s23, 0
      %p174 = por %p172, %p173
      %p175 = scmp.le.s32.totalorder 1, %s17
      %p176 = scmp.lt.s32.totalorder %s17, 3
      %p177 = pnand %p175, %p176
      %p178 = pneg %p177
      // Predicated region
      $region9: #{ca_block_forward.3} parent=5 // pred_check
        _
      $region10: #{ca_block_forward.3} parent=5 // pred_check_branch
        %180 = sbr.rel (%p177) target = $region12
      $region11: #{ca_block_forward.3} parent=5 // pred_region
        %s181 = ssub.s32 %s17, 1
      $region12: #{ca_block_forward.3} parent=5 // pred_fallthru
        _
      %p182 = scmp.lt.s32.totalorder %s17, 2
      // Predicated region
      $region13: #{ca_block_forward.3} parent=5 // pred_check
        %p183 = pneg %p182
      $region14: #{ca_block_forward.3} parent=5 // pred_check_branch
        %185 = sbr.rel (%p183) target = $region16
      $region15: #{ca_block_forward.3} parent=5 // pred_region
        // Predicated region
        $region17: #{ca_block_forward.3} parent=15 // pred_check
          %p186 = pneg %p51
        $region18: #{ca_block_forward.3} parent=15 // pred_check_branch
          %188 = sbr.rel (%p186) target = $region20
        $region19: #{ca_block_forward.3} parent=15 // pred_region
          %s189 = smul.u32 2, %s25
          %p190 = scmp.lt.s32.totalorder %s24, 1
          %s191 = scalar_select %p190, %s24, 1
          %p192 = scmp.lt.s32.totalorder %s189, 1
          %s193 = scalar_select %p192, %s189, 1
          %s194 = smul.addr %s191, 8
          %s195 = sadd.s32 %s193, %s194
          %s196 = smul.addr %s195, 8
          %s197 = scalar_lea.vmem %s0, %s196
          %s198 = smul.u32 2, %s25
        $region20: #{ca_block_forward.3} parent=15 // pred_fallthru
          _
        // Predicated region
        $region21: #{ca_block_forward.3} parent=15 // pred_check
          %p199 = pneg %p79
        $region22: #{ca_block_forward.3} parent=15 // pred_check_branch
          %201 = sbr.rel (%p199) target = $region24
        $region23: #{ca_block_forward.3} parent=15 // pred_region
          %s202 = smul.u32 2, %s25
          %p203 = scmp.lt.s32.totalorder %s24, 1
          %s204 = scalar_select %p203, %s24, 1
          %p205 = scmp.lt.s32.totalorder %s202, 1
          %s206 = scalar_select %p205, %s202, 1
          %s207 = smul.addr %s204, 8
          %s208 = sadd.s32 %s206, %s207
          %s209 = smul.addr %s208, 8
          %s210 = scalar_lea.vmem %s1, %s209
          %s211 = smul.u32 2, %s25
        $region24: #{ca_block_forward.3} parent=15 // pred_fallthru
          _
        // Predicated region
        $region25: #{ca_block_forward.3} parent=15 // pred_check
          %p212 = pneg %p105
        $region26: #{ca_block_forward.3} parent=15 // pred_check_branch
          %214 = sbr.rel (%p212) target = $region28
        $region27: #{ca_block_forward.3} parent=15 // pred_region
          %p215 = scmp.lt.s32.totalorder %s24, 1
          %s216 = scalar_select %p215, %s24, 1
          %s217 = smul.addr %s216, 4
          %s218 = scalar_lea.vmem %s2, %s217
        $region28: #{ca_block_forward.3} parent=15 // pred_fallthru
          _
      $region16: #{ca_block_forward.3} parent=5 // pred_fallthru
        _
      %p219 = scmp.le.s32.totalorder 1, %s17
      %p220 = scmp.lt.s32.totalorder %s17, 3
      %p221 = pnand %p219, %p220
      %p222 = pneg %p221
      // Predicated region
      $region29: #{ca_block_forward.3} parent=5 // pred_check
        _
      $region30: #{ca_block_forward.3} parent=5 // pred_check_branch
        %224 = sbr.rel (%p221) target = $region32
      $region31: #{ca_block_forward.3} parent=5 // pred_region
        %s225 = ssub.s32 %s17, 1
        %s226 = smul.u32 2, %s27
        %p227 = scmp.lt.s32.totalorder %s26, 1
        %s228 = scalar_select %p227, %s26, 1
        %p229 = scmp.lt.s32.totalorder %s226, 1
        %s230 = scalar_select %p229, %s226, 1
        %s231 = smul.addr %s228, 8
        %s232 = sadd.s32 %s230, %s231
        %s233 = smul.addr %s232, 8
        %s234 = scalar_lea.vmem %s0, %s233
        %p235 = pneg %p57
        %p236 = pneg %p54
        %s237 = smul.u32 2, %s27
        %p238 = scmp.lt.s32.totalorder %s26, 1
        %s239 = scalar_select %p238, %s26, 1
        %p240 = scmp.lt.s32.totalorder %s237, 1
        %s241 = scalar_select %p240, %s237, 1
        %s242 = smul.addr %s239, 8
        %s243 = sadd.s32 %s241, %s242
        %s244 = smul.addr %s243, 8
        %s245 = scalar_lea.vmem %s1, %s244
        %p246 = pneg %p85
        %p247 = pneg %p82
        %p248 = scmp.lt.s32.totalorder %s26, 1
        %s249 = scalar_select %p248, %s26, 1
        %s250 = smul.addr %s249, 4
        %s251 = scalar_lea.vmem %s2, %s250
        %p252 = pneg %p111
        %p253 = pneg %p108
        %p254 = pneg %p139
        %p255 = pneg %p136
        %s256 = sand.u32 %s126, 1
        %s257 = scalar_lea.sflag [#allocation3], %s256
        %s258 = sand.u32 %s126, 1
        %s259 = smul.addr %s258, 64
        %s260 = scalar_lea.vmem [#allocation2], %s259
        %p261 = pneg %p167
        %p262 = pneg %p164
        %s263 = sand.u32 %s154, 1
        %s264 = scalar_lea.sflag [#allocation5], %s263
        %s265 = sand.u32 %s154, 1
        %s266 = smul.addr %s265, 64
        %s267 = scalar_lea.vmem [#allocation4], %s266
        %s268 = smul.u32 2, %s27
        %p269 = scmp.lt.s32.totalorder %s26, 1
        %s270 = scalar_select %p269, %s26, 1
        %p271 = scmp.lt.s32.totalorder %s268, 1
        %s272 = scalar_select %p271, %s268, 1
        %s273 = smul.addr %s270, 8
        %s274 = sadd.s32 %s272, %s273
        %s275 = smul.addr %s274, 8
        %s276 = scalar_lea.vmem %s0, %s275
        %s277 = smul.u32 2, %s27
        %s278 = smul.u32 2, %s27
        %p279 = scmp.lt.s32.totalorder %s26, 1
        %s280 = scalar_select %p279, %s26, 1
        %p281 = scmp.lt.s32.totalorder %s278, 1
        %s282 = scalar_select %p281, %s278, 1
        %s283 = smul.addr %s280, 8
        %s284 = sadd.s32 %s282, %s283
        %s285 = smul.addr %s284, 8
        %s286 = scalar_lea.vmem %s1, %s285
        %s287 = smul.u32 2, %s27
        %p288 = scmp.lt.s32.totalorder %s26, 1
        %s289 = scalar_select %p288, %s26, 1
        %s290 = smul.addr %s289, 4
        %s291 = scalar_lea.vmem %s2, %s290
        %s292 = smul.u32 2, %s27
        %s293 = smul.u32 2, %s27
        %v294 = vld [vmem:[%s291] sm:$0xf]
        %v297 = vunpack.c.l.s4 1966171168
        %v298 = vunpack.c.0.s8 %v297
        %v299 = vlaneseq
        %v300 = vshrl.u32 %v299, 7
        %v301 = vsub.s32 %v298, %v300
        %v302 = vrot.slane %v294, %v301
        %v303 = vcombine.high %v302, %v302
        %v305 = vunpack.c.l.s4 1966171168
        %v306 = vunpack.c.0.s8 %v305
        %v307 = vlaneseq
        %v308 = vshrl.u32 %v307, 7
        %v309 = vsub.s32 %v306, %v308
        %v310 = vrot.slane %v302, %v309
        %v312 = vunpack.c.l.s4 1966171168
        %v313 = vunpack.c.0.s8 %v312
        %v314 = vlaneseq
        %v315 = vshrl.u32 %v314, 7
        %v316 = vsub.s32 %v313, %v315
        %v317 = vrot.slane %v303, %v316
        %v318 = vcombine.high %v310, %v310
        %v319 = vcombine.high %v317, %v317
        %v320 = vld [vmem:[%s276] sm:$0xff]
        %v321 = vld [vmem:[%s276 + $0x8] sm:$0xff]
        %v322 = vld [vmem:[%s276 + $0x10] sm:$0xff]
        %v323 = vld [vmem:[%s276 + $0x18] sm:$0xff]
        %v324 = vld [vmem:[%s276 + $0x20] sm:$0xff]
        %v325 = vld [vmem:[%s276 + $0x28] sm:$0xff]
        %v326 = vld [vmem:[%s276 + $0x30] sm:$0xff]
        %v327 = vld [vmem:[%s276 + $0x38] sm:$0xff]
        %v328 = vlaneseq
        %v329 = vshrl.u32 %v328, 7
        %v330 = vsub.s32 0, %v329
        %v331 = vrot.slane %v310, %v330
        %v332 = vlaneseq
        %v333 = vshrl.u32 %v332, 7
        %v334 = vsub.s32 0, %v333
        %v335 = vrot.slane %v317, %v334
        %v336 = vlaneseq
        %v337 = vshrl.u32 %v336, 7
        %v338 = vsub.s32 0, %v337
        %v339 = vrot.slane %v318, %v338
        %v340 = vlaneseq
        %v341 = vshrl.u32 %v340, 7
        %v342 = vsub.s32 0, %v341
        %v343 = vrot.slane %v319, %v342
        %v348 = vmul.f32 %v320, %v331
        %v349 = vmul.f32 %v321, %v331
        %v350 = vmul.f32 %v322, %v335
        %v351 = vmul.f32 %v323, %v335
        %v352 = vmul.f32 %v324, %v339
        %v353 = vmul.f32 %v325, %v339
        %v354 = vmul.f32 %v326, %v343
        %v355 = vmul.f32 %v327, %v343
        %vm356 = vcmask 130048
        %357 = vst.msk [vmem:[%s260] sm:$0xff] %vm356, %v348
        %358 = vst.msk [vmem:[%s260 + $0x8] sm:$0xff] %vm356, %v349
        %359 = vst.msk [vmem:[%s260 + $0x10] sm:$0xff] %vm356, %v350
        %360 = vst.msk [vmem:[%s260 + $0x18] sm:$0xff] %vm356, %v351
        %361 = vst.msk [vmem:[%s260 + $0x20] sm:$0xff] %vm356, %v352
        %362 = vst.msk [vmem:[%s260 + $0x28] sm:$0xff] %vm356, %v353
        %363 = vst.msk [vmem:[%s260 + $0x30] sm:$0xff] %vm356, %v354
        %364 = vst.msk [vmem:[%s260 + $0x38] sm:$0xff] %vm356, %v355
        %v365 = vld [vmem:[%s286] sm:$0xff]
        %v366 = vld [vmem:[%s286 + $0x8] sm:$0xff]
        %v367 = vld [vmem:[%s286 + $0x10] sm:$0xff]
        %v368 = vld [vmem:[%s286 + $0x18] sm:$0xff]
        %v369 = vld [vmem:[%s286 + $0x20] sm:$0xff]
        %v370 = vld [vmem:[%s286 + $0x28] sm:$0xff]
        %v371 = vld [vmem:[%s286 + $0x30] sm:$0xff]
        %v372 = vld [vmem:[%s286 + $0x38] sm:$0xff]
        %v373 = vmul.f32 %v365, %v331
        %v374 = vmul.f32 %v366, %v331
        %v375 = vmul.f32 %v367, %v335
        %v376 = vmul.f32 %v368, %v335
        %v377 = vmul.f32 %v369, %v339
        %v378 = vmul.f32 %v370, %v339
        %v379 = vmul.f32 %v371, %v343
        %v380 = vmul.f32 %v372, %v343
        %381 = vst.msk [vmem:[%s267] sm:$0xff] %vm356, %v373
        %382 = vst.msk [vmem:[%s267 + $0x8] sm:$0xff] %vm356, %v374
        %383 = vst.msk [vmem:[%s267 + $0x10] sm:$0xff] %vm356, %v375
        %384 = vst.msk [vmem:[%s267 + $0x18] sm:$0xff] %vm356, %v376
        %385 = vst.msk [vmem:[%s267 + $0x20] sm:$0xff] %vm356, %v377
        %386 = vst.msk [vmem:[%s267 + $0x28] sm:$0xff] %vm356, %v378
        %387 = vst.msk [vmem:[%s267 + $0x30] sm:$0xff] %vm356, %v379
        %388 = vst.msk [vmem:[%s267 + $0x38] sm:$0xff] %vm356, %v380
        %s389 = sand.u32 %s126, 1
        %s390 = scalar_lea.sflag [#allocation3], %s389
        %s391 = sand.u32 %s126, 1
        %s392 = smul.addr %s391, 64
        %s393 = scalar_lea.vmem [#allocation2], %s392
        %s394 = sand.u32 %s154, 1
        %s395 = scalar_lea.sflag [#allocation5], %s394
        %s396 = sand.u32 %s154, 1
        %s397 = smul.addr %s396, 64
        %s398 = scalar_lea.vmem [#allocation4], %s397
        // Predicated region
        $region33: #{ca_block_forward.3} parent=31 // pred_check
          %p399 = pneg %p136
        $region34: #{ca_block_forward.3} parent=31 // pred_check_branch
          %401 = sbr.rel (%p399) target = $region36
        $region35: #{ca_block_forward.3} parent=31 // pred_region
          %s402 = smul.u32 2, %s27
          %s404 = ssub.s32 1024, 1024
          %405 = vsyncadd %s390, %s404
          %s406 = smul.addr %s26, 8
          %s407 = sadd.s32 %s402, %s406
          %s408 = smul.addr %s407, 128
          %s409 = scalar_lea.hbm %s3, %s408
          %s410 = sshll.u32 %s393, 4
          %s411 = int_to_ptr.vmem [resolvable:$true] %s410
          %416 = dma.vmem_to_hbm [thread:$0]  %s411, 1024, %s409, %s390, 128, 128, 8
        $region36: #{ca_block_forward.3} parent=31 // pred_fallthru
          _
        // Predicated region
        $region37: #{ca_block_forward.3} parent=31 // pred_check
          %p417 = pneg %p164
        $region38: #{ca_block_forward.3} parent=31 // pred_check_branch
          %419 = sbr.rel (%p417) target = $region40
        $region39: #{ca_block_forward.3} parent=31 // pred_region
          %s420 = smul.u32 2, %s27
          %s422 = ssub.s32 1024, 1024
          %423 = vsyncadd %s395, %s422
          %s424 = smul.addr %s26, 8
          %s425 = sadd.s32 %s420, %s424
          %s426 = smul.addr %s425, 128
          %s427 = scalar_lea.hbm %s4, %s426
          %s428 = sshll.u32 %s398, 4
          %s429 = int_to_ptr.vmem [resolvable:$true] %s428
          %434 = dma.vmem_to_hbm [thread:$0]  %s429, 1024, %s427, %s395, 128, 128, 8
        $region40: #{ca_block_forward.3} parent=31 // pred_fallthru
          _
      $region32: #{ca_block_forward.3} parent=5 // pred_fallthru
        _
      %p435 = scmp.le.s32.totalorder 2, %s17
      // Predicated region
      $region41: #{ca_block_forward.3} parent=5 // pred_check
        %p436 = pneg %p435
      $region42: #{ca_block_forward.3} parent=5 // pred_check_branch
        %438 = sbr.rel (%p436) target = $region44
      $region43: #{ca_block_forward.3} parent=5 // pred_region
        %s439 = ssub.s32 %s17, 2
        // Predicated region
        $region45: #{ca_block_forward.3} parent=43 // pred_check
          %p440 = pneg %p142
        $region46: #{ca_block_forward.3} parent=43 // pred_check_branch
          %442 = sbr.rel (%p440) target = $region48
        $region47: #{ca_block_forward.3} parent=43 // pred_region
          %s443 = sand.u32 %s127, 1
          %s444 = scalar_lea.sflag [#allocation3], %s443
          %s445 = sand.u32 %s127, 1
          %s446 = smul.addr %s445, 64
          %s447 = scalar_lea.vmem [#allocation2], %s446
          %448 = dma.done %s444, 1024
        $region48: #{ca_block_forward.3} parent=43 // pred_fallthru
          _
        // Predicated region
        $region49: #{ca_block_forward.3} parent=43 // pred_check
          %p449 = pneg %p170
        $region50: #{ca_block_forward.3} parent=43 // pred_check_branch
          %451 = sbr.rel (%p449) target = $region52
        $region51: #{ca_block_forward.3} parent=43 // pred_region
          %s452 = sand.u32 %s155, 1
          %s453 = scalar_lea.sflag [#allocation5], %s452
          %s454 = sand.u32 %s155, 1
          %s455 = smul.addr %s454, 64
          %s456 = scalar_lea.vmem [#allocation4], %s455
          %457 = dma.done %s453, 1024
        $region52: #{ca_block_forward.3} parent=43 // pred_fallthru
          _
      $region44: #{ca_block_forward.3} parent=5 // pred_fallthru
        _
    $region6: #{ca_block_forward.3} parent=1 // loop_footer
      %s21 = sadd.s32 1, %s17
    $region7: #{ca_block_forward.3} parent=1 // loop_footer_branch
      %16 = sbr.rel target = $region3
    $region8: #{ca_block_forward.3} parent=1 // loop_exit
      _
    %458 = vsyncpa [#allocation3], 1
    %s459 = scalar_lea.sflag [#allocation3], 1
    %460 = vsyncpa %s459, 1
    %461 = vsyncpa [#allocation5], 1
    %s462 = scalar_lea.sflag [#allocation5], 1
    %463 = vsyncpa %s462, 1

</llo_original>
